<compile_context>
chip_gen: v7x
topology: tpu7x:2x2x1
jax: 0.10.0
libtpu: 0.0.40
codegen_flags: <defaults>
</compile_context>

<pallas_src>
import functools

import jax
import jax.numpy as jnp
from jax.experimental import pallas as pl
from jax.experimental.pallas import tpu as pltpu


def _round_up(x, m):
    return (x + m - 1) // m * m


# ----------------------------------------------------------------------------
# Kernel
# ----------------------------------------------------------------------------
def _mapping_net_kernel(layer_meta, x_ref, w_ref, b_ref, out_ref):
    """Fused MLP stack + fused (gamma|beta) head.

    layer_meta: static tuple of (row_off, Kp, Np, bias_off, apply_relu)
    x_ref  : (tb, Kp0)            bf16  lane-padded input tile
    w_ref  : (sum(Kp_i), Wmax)    bf16  packed per-layer zero-padded weights
    b_ref  : (1, sum(Np_i))       f32   packed zero-padded biases
    out_ref: (tb, Np_last)        f32   lane-dense fused gamma|beta output
    """
    h = x_ref[...]  # bf16 carried activations
    for (row_off, kp, npad, b_off, apply_relu) in layer_meta:
        # Static, (8,128)/(16,128)-tile-aligned slices: free.
        w = w_ref[row_off:row_off + kp, :npad]           # (Kp, Np) bf16
        acc = jnp.dot(h, w, preferred_element_type=jnp.float32)
        acc = acc + b_ref[:, b_off:b_off + npad]          # f32 bias add
        if apply_relu:
            h = jnp.maximum(acc, 0.0).astype(jnp.bfloat16)  # hidden layer
        else:
            h = acc                                         # fused head (f32)
    out_ref[...] = h.astype(out_ref.dtype)


# ----------------------------------------------------------------------------
# One-time parameter packing (hoisted out of the per-call forward path)
# ----------------------------------------------------------------------------
def pack_mapping_net_params(params, nfeatures):
    """Pack all Linear weights/biases into two tile-aligned buffers.

    params: dict with
      'hidden': list of (W, b), W: (f_in, f_out), b: (f_out,)
      'gamma' : (Wg, bg), Wg: (h_last, nfeatures)
      'beta'  : (Wb, bb), Wb: (h_last, nfeatures)
    Returns a dict consumed by mapping_net_forward.  Call ONCE per parameter
    set (e.g. at init); the forward then does no per-call packing work.
    """
    hidden = list(params["hidden"])
    wg, bg = params["gamma"]
    wb, bb = params["beta"]

    # Fuse the two heads into a single matmul along the output dim.
    w_head = jnp.concatenate([wg, wb], axis=1)     # (h_last, 2*nfeatures)
    b_head = jnp.concatenate([bg, bb], axis=0)     # (2*nfeatures,)
    layers = hidden + [(w_head, b_head)]

    # Common slab width = widest padded output (per-layer compute still uses
    # the exact (Kp_i, Np_i) slice, so no zero-FLOP MXU work).
    w_max = max(_round_up(w.shape[1], 128) for (w, _) in layers)

    meta = []
    w_blocks, b_blocks = [], []
    row_off, b_off = 0, 0
    for idx, (w, b) in enumerate(layers):
        fin, fout = w.shape
        kp = _round_up(fin, 128)
        npad = _round_up(fout, 128)
        wp = jnp.zeros((kp, w_max), jnp.float32).at[:fin, :fout].set(
            w.astype(jnp.float32))
        bp = jnp.zeros((1, npad), jnp.float32).at[0, :fout].set(
            b.astype(jnp.float32))
        w_blocks.append(wp)
        b_blocks.append(bp)
        meta.append((row_off, kp, npad, b_off, idx < len(layers) - 1))
        row_off += kp
        b_off += npad

    return {
        "w": jnp.concatenate(w_blocks, axis=0).astype(jnp.bfloat16),
        "b": jnp.concatenate(b_blocks, axis=1),     # f32
        "meta": tuple(meta),
        "in_features": layers[0][0].shape[0],
        "k0": meta[0][1],
        "out_width": meta[-1][2],
        "nfeatures": int(nfeatures),
    }


# ----------------------------------------------------------------------------
# Batch-tile selection (16-row aligned for the bf16 input tile)
# ----------------------------------------------------------------------------
def _select_batch_tile(batch, max_tile=512):
    b_aligned = _round_up(batch, 16)
    if b_aligned <= 128:
        # Tiny batch: split in two when cheaply possible (>=2 grid steps for
        # v7x's second TC / DMA overlap), otherwise one small tile.
        if b_aligned >= 64 and b_aligned % 32 == 0:
            return b_aligned // 2
        return b_aligned
    cap = max(128, min(_round_up(int(max_tile), 16), 512))
    candidates = [c for c in (128, 256, 512) if c <= cap] or [128]

    def key(c):
        padded = _round_up(batch, c)
        waste = padded - batch
        steps = padded // c
        # 1) minimize padded-row waste; 2) prefer >=2 grid steps (v7x megacore,
        # pipeline overlap); 3) prefer the larger tile (MXU M-fill on v6e/v7x).
        return (waste, 0 if steps >= 2 else 1, -c)

    return min(candidates, key=key)


# ----------------------------------------------------------------------------
# Forward
# ----------------------------------------------------------------------------
def mapping_net_forward(x, packed, *, max_batch_tile=512):
    """x: (batch, in_features) -> (gamma, beta), each (batch, nfeatures) f32."""
    batch, in_features = x.shape
    assert in_features == packed["in_features"], "input width mismatch"

    k0 = packed["k0"]
    pout = packed["out_width"]
    nf = packed["nfeatures"]
    w_packed = packed["w"]
    b_packed = packed["b"]
    meta = packed["meta"]

    tb = _select_batch_tile(batch, max_batch_tile)
    batch_pad = _round_up(batch, tb)

    # bf16 input tile: halves the HBM->VMEM input DMA bytes.
    x_pad = jnp.zeros((batch_pad, k0), jnp.bfloat16).at[:batch, :in_features].set(
        x.astype(jnp.bfloat16))

    n_rows, w_width = w_packed.shape
    total_b = b_packed.shape[1]

    # Only raise the scoped-VMEM limit when the double-buffered working set
    # would not fit the conservative (v5e) default.
    est_vmem = (2 * tb * k0 * 2            # bf16 x tile, double-buffered
                + 2 * tb * pout * 4        # f32 out tile, double-buffered
                + 2 * (n_rows * w_width * 2 + total_b * 4))  # weights + bias
    cparams = {"dimension_semantics": ("parallel",)}
    if est_vmem > (14 << 20):
        cparams["vmem_limit_bytes"] = min(int(est_vmem * 3 // 2), 100 << 20)

    kernel = functools.partial(_mapping_net_kernel, meta)

    out = pl.pallas_call(
        kernel,
        out_shape=jax.ShapeDtypeStruct((batch_pad, pout), jnp.float32),
        grid=(batch_pad // tb,),
        in_specs=[
            pl.BlockSpec((tb, k0), lambda i: (i, 0)),              # x: batch tile
            pl.BlockSpec((n_rows, w_width), lambda i: (0, 0)),     # weights: resident
            pl.BlockSpec((1, total_b), lambda i: (0, 0)),          # biases: resident
        ],
        out_specs=pl.BlockSpec((tb, pout), lambda i: (i, 0)),
        compiler_params=pltpu.CompilerParams(**cparams),
    )(x_pad, w_packed, b_packed)

    gamma = out[:batch, :nf]
    beta = out[:batch, nf:2 * nf]
    return gamma, beta


# ----------------------------------------------------------------------------
# Init + pure-JAX reference (for correctness checks)
# ----------------------------------------------------------------------------
def init_mapping_net_params(key, in_features, hidden_features, nfeatures):
    """Deterministic synthetic init (PyTorch-default-style uniform)."""
    lyr_fts = [in_features] + list(hidden_features)
    params = {"hidden": []}
    keys = jax.random.split(key, 2 * (len(lyr_fts) - 1) + 4)
    k_idx = 0

    def linear_init(kw, kb, fan_in, fan_out):
        bound = 1.0 / jnp.sqrt(float(fan_in))
        w = jax.random.uniform(kw, (fan_in, fan_out), jnp.float32, -bound, bound)
        b = jax.random.uniform(kb, (fan_out,), jnp.float32, -bound, bound)
        return w, b

    for i in range(len(lyr_fts) - 1):
        w, b = linear_init(keys[k_idx], keys[k_idx + 1], lyr_fts[i], lyr_fts[i + 1])
        k_idx += 2
        params["hidden"].append((w, b))

    params["gamma"] = linear_init(keys[k_idx], keys[k_idx + 1], lyr_fts[-1], nfeatures)
    k_idx += 2
    params["beta"] = linear_init(keys[k_idx], keys[k_idx + 1], lyr_fts[-1], nfeatures)
    return params


def mapping_net_reference(x, params, bf16_matmul=False):
    """Pure-JAX reference. bf16_matmul=True mirrors the kernel's MXU precision."""
    def mm(a, w):
        if bf16_matmul:
            return jnp.dot(a.astype(jnp.bfloat16), w.astype(jnp.bfloat16),
                           preferred_element_type=jnp.float32)
        return jnp.dot(a, w)

    h = x
    for (w, b) in params["hidden"]:
        h = jnp.maximum(mm(h, w) + b, 0.0)
    wg, bg = params["gamma"]
    wb, bb = params["beta"]
    return mm(h, wg) + bg, mm(h, wb) + bb


if __name__ == "__main__":
    # Small shapes consistent with the module's forward:
    #   input: (batch, in_features); MLP: in_features -> hidden_features;
    #   heads: last hidden -> nfeatures (gamma) and -> nfeatures (beta).
    batch = 8
    in_features = 16
    hidden_features = [32, 32]
    nfeatures = 64

    key = jax.random.PRNGKey(0)
    k_x, k_p = jax.random.split(key)
    x = jax.random.normal(k_x, (batch, in_features), jnp.float32)
    params = init_mapping_net_params(k_p, in_features, hidden_features, nfeatures)

    # One-time packing (hoisted out of the forward path).
    packed = pack_mapping_net_params(params, nfeatures)
    packed = jax.tree_util.tree_map(
        lambda a: jax.block_until_ready(a) if isinstance(a, jax.Array) else a, packed)

    gamma, beta = mapping_net_forward(x, packed, max_batch_tile=512)
    gamma = jax.block_until_ready(gamma)
    beta = jax.block_until_ready(beta)

    assert gamma.shape == (batch, nfeatures) and beta.shape == (batch, nfeatures)

    # Tight check vs a reference with matching bf16-operand / f32-accumulate matmuls.
    g_bf, b_bf = mapping_net_reference(x, params, bf16_matmul=True)
    assert jnp.allclose(gamma, g_bf, atol=1e-2, rtol=1e-2)
    assert jnp.allclose(beta, b_bf, atol=1e-2, rtol=1e-2)

    # Loose check vs the pure-f32 reference (bf16 matmul precision loss only).
    g_f32, b_f32 = mapping_net_reference(x, params, bf16_matmul=False)
    assert jnp.allclose(gamma, g_f32, atol=1e-1, rtol=1e-1)
    assert jnp.allclose(beta, b_f32, atol=1e-1, rtol=1e-1)

    print("KERNEL_OK")
</pallas_src>

<mosaic_0001>
module attributes {stable_mosaic.version = 11 : i64} {
  func.func @_mapping_net_kernel(%arg0: i32, %arg1: memref<16x128xbf16, #tpu.memory_space<vmem>>, %arg2: memref<384x128xbf16, #tpu.memory_space<vmem>>, %arg3: memref<1x384xf32, #tpu.memory_space<vmem>>, %arg4: memref<16x128xf32, #tpu.memory_space<vmem>>) attributes {dimension_semantics = [#tpu.dimension_semantics<parallel>], iteration_bounds = array<i64: 1>, scalar_prefetch = 0 : i64, scratch_operands = 0 : i64, tpu.core_type = #tpu.core_type<tc>, window_params = [{transform_indices = @transform_0, window_bounds = array<i64: 16, 128>}, {pipeline_mode = #tpu.pipeline_mode<synchronous>, transform_indices = @transform_1, window_bounds = array<i64: 384, 128>}, {pipeline_mode = #tpu.pipeline_mode<synchronous>, transform_indices = @transform_2, window_bounds = array<i64: 1, 384>}, {transform_indices = @transform_3, window_bounds = array<i64: 16, 128>}]} {
    %c0 = arith.constant 0 : index
    %c0_0 = arith.constant 0 : index
    %0 = vector.load %arg1[%c0, %c0_0] : memref<16x128xbf16, #tpu.memory_space<vmem>>, vector<16x128xbf16>
    %c0_1 = arith.constant 0 : index
    %c0_2 = arith.constant 0 : index
    %1 = vector.load %arg2[%c0_1, %c0_2] : memref<384x128xbf16, #tpu.memory_space<vmem>>, vector<128x128xbf16>
    %cst = arith.constant dense<0.000000e+00> : vector<16x128xf32>
    %2 = tpu.matmul %0, %1, %cst {dimension_numbers = #tpu.dot_dimension_numbers<[1], [0], [0], [1], [0, 0, 1, 1], [], []>} : vector<16x128xbf16>, vector<128x128xbf16>, vector<16x128xf32> -> vector<16x128xf32>
    %c0_3 = arith.constant 0 : index
    %c0_4 = arith.constant 0 : index
    %3 = vector.load %arg3[%c0_3, %c0_4] : memref<1x384xf32, #tpu.memory_space<vmem>>, vector<1x128xf32>
    %4 = vector.broadcast %3 : vector<1x128xf32> to vector<16x128xf32>
    %5 = arith.addf %2, %4 : vector<16x128xf32>
    %cst_5 = arith.constant 0.000000e+00 : f32
    %6 = vector.broadcast %cst_5 : f32 to vector<16x128xf32>
    %7 = arith.maximumf %5, %6 : vector<16x128xf32>
    %8 = arith.truncf %7 : vector<16x128xf32> to vector<16x128xbf16>
    %c128 = arith.constant 128 : index
    %c0_6 = arith.constant 0 : index
    %9 = vector.load %arg2[%c128, %c0_6] : memref<384x128xbf16, #tpu.memory_space<vmem>>, vector<128x128xbf16>
    %cst_7 = arith.constant dense<0.000000e+00> : vector<16x128xf32>
    %10 = tpu.matmul %8, %9, %cst_7 {dimension_numbers = #tpu.dot_dimension_numbers<[1], [0], [0], [1], [0, 0, 1, 1], [], []>} : vector<16x128xbf16>, vector<128x128xbf16>, vector<16x128xf32> -> vector<16x128xf32>
    %c0_8 = arith.constant 0 : index
    %c128_9 = arith.constant 128 : index
    %11 = vector.load %arg3[%c0_8, %c128_9] : memref<1x384xf32, #tpu.memory_space<vmem>>, vector<1x128xf32>
    %12 = vector.broadcast %11 : vector<1x128xf32> to vector<16x128xf32>
    %13 = arith.addf %10, %12 : vector<16x128xf32>
    %cst_10 = arith.constant 0.000000e+00 : f32
    %14 = vector.broadcast %cst_10 : f32 to vector<16x128xf32>
    %15 = arith.maximumf %13, %14 : vector<16x128xf32>
    %16 = arith.truncf %15 : vector<16x128xf32> to vector<16x128xbf16>
    %c256 = arith.constant 256 : index
    %c0_11 = arith.constant 0 : index
    %17 = vector.load %arg2[%c256, %c0_11] : memref<384x128xbf16, #tpu.memory_space<vmem>>, vector<128x128xbf16>
    %cst_12 = arith.constant dense<0.000000e+00> : vector<16x128xf32>
    %18 = tpu.matmul %16, %17, %cst_12 {dimension_numbers = #tpu.dot_dimension_numbers<[1], [0], [0], [1], [0, 0, 1, 1], [], []>} : vector<16x128xbf16>, vector<128x128xbf16>, vector<16x128xf32> -> vector<16x128xf32>
    %c0_13 = arith.constant 0 : index
    %c256_14 = arith.constant 256 : index
    %19 = vector.load %arg3[%c0_13, %c256_14] : memref<1x384xf32, #tpu.memory_space<vmem>>, vector<1x128xf32>
    %20 = vector.broadcast %19 : vector<1x128xf32> to vector<16x128xf32>
    %21 = arith.addf %18, %20 : vector<16x128xf32>
    %c0_15 = arith.constant 0 : index
    %c0_16 = arith.constant 0 : index
    %22 = vector.load %arg4[%c0_15, %c0_16] : memref<16x128xf32, #tpu.memory_space<vmem>>, vector<16x128xf32>
    tpu.vector_store %arg4[%c0_15, %c0_16], %21 {strides = array<i32>} : memref<16x128xf32, #tpu.memory_space<vmem>>, vector<16x128xf32>,
    return
  }
  func.func @transform_0(%arg0: i32) -> (i32, i32) {
    %c0_i32 = arith.constant 0 : i32
    %c0_i32_0 = arith.constant 0 : i32
    return %arg0, %c0_i32 : i32, i32
  }
  func.func @transform_1(%arg0: i32) -> (i32, i32) {
    %c0_i32 = arith.constant 0 : i32
    %c0_i32_0 = arith.constant 0 : i32
    %c0_i32_1 = arith.constant 0 : i32
    return %c0_i32, %c0_i32_0 : i32, i32
  }
  func.func @transform_2(%arg0: i32) -> (i32, i32) {
    %c0_i32 = arith.constant 0 : i32
    %c0_i32_0 = arith.constant 0 : i32
    %c0_i32_1 = arith.constant 0 : i32
    return %c0_i32, %c0_i32_0 : i32, i32
  }
  func.func @transform_3(%arg0: i32) -> (i32, i32) {
    %c0_i32 = arith.constant 0 : i32
    %c0_i32_0 = arith.constant 0 : i32
    return %arg0, %c0_i32 : i32, i32
  }
}

</mosaic_0001>

<llo_original>
// kernel: tpu_custom_call.1
$region0: #{tpu_custom_call.1}
  #allocation0 [shape = 'u32[]', space=smem, size = 0x4, offset = 0x4, fixed_abs, tag = 'smem constant byte address 0x4 - core index']
  #allocation1 [shape = 'u32[144,128]{1,0:T(1,128)}', space=vmem, size = 0x12000, scoped, tag = 'internal scratch']
  %s0 = inlined_call_operand.hbm [shape: bf16[16,128], index: 0, kind: input, shape index: {}]
  %s1 = inlined_call_operand.hbm [shape: bf16[384,128], index: 1, kind: input, shape index: {}]
  %s2 = inlined_call_operand.vmem [shape: f32[1,384], index: 2, kind: input, shape index: {}]
  %s3 = inlined_call_operand.hbm [shape: f32[16,128], index: 3, kind: output, shape index: {}]
  %s4 = sld [smem:[#allocation0]]
  $region30: #{tpu_custom_call.1} parent=0
    _
  %s6 = ssub.s32 1, %s4
  %s7 = scalar_select 0, %s6, %s4
  $region1: #{tpu_custom_call.1} parent=0
    #allocation2 [shape = 'u8[4096]{0}', space=vmem, size = 0x1000, scoped, tag = 'input window, operand 0, single buffered']
    #allocation3 [shape = 's32[1]{0}', space=sflag, size = 0x4, scoped, tag = 'scoped memory for tpu_custom_call.1']
    #allocation4 [shape = 's32[1]{0}', space=sflag, size = 0x4, scoped, tag = 'scoped memory for tpu_custom_call.1']
    #allocation5 [shape = 'u8[98304]{0}', space=vmem, size = 0x18000, scoped, tag = 'input window, operand 1, single buffered']
    #allocation6 [shape = 's32[1]{0}', space=sflag, size = 0x4, scoped, tag = 'scoped memory for tpu_custom_call.1']
    #allocation7 [shape = 'u8[8192]{0}', space=vmem, size = 0x2000, scoped, tag = 'output window, operand 0, single buffered']
    %8 = vsyncpa [#allocation3], 0
    %9 = vsyncpa [#allocation6], 0
    %10 = vsyncpa [#allocation4], 0
    // Predicated region
    $region2: #{tpu_custom_call.1} parent=1 // pred_check
      _
    $region3: #{tpu_custom_call.1} parent=1 // pred_check_branch
      %12 = sbr.rel (0) target = $region5
    $region4: #{tpu_custom_call.1} parent=1 // pred_region
      %s14 = ssub.s32 128, 128
      %15 = vsyncadd [#allocation3], %s14
      %s16 = sshll.u32 [#allocation2], 4
      %s17 = int_to_ptr.vmem [resolvable:$true] %s16
      %22 = dma.hbm_to_vmem [thread:$0]  %s0, 128, %s17, [#allocation3], 64, 64, 4
    $region5: #{tpu_custom_call.1} parent=1 // pred_fallthru
      _
    // Predicated region
    $region6: #{tpu_custom_call.1} parent=1 // pred_check
      _
    $region7: #{tpu_custom_call.1} parent=1 // pred_check_branch
      %24 = sbr.rel (0) target = $region9
    $region8: #{tpu_custom_call.1} parent=1 // pred_region
      %s26 = ssub.s32 3072, 3072
      %27 = vsyncadd [#allocation6], %s26
      %s28 = sshll.u32 [#allocation5], 4
      %s29 = int_to_ptr.vmem [resolvable:$true] %s28
      %34 = dma.hbm_to_vmem [thread:$0]  %s1, 3072, %s29, [#allocation6], 64, 64, 4
    $region9: #{tpu_custom_call.1} parent=1 // pred_fallthru
      _
    // Predicated region
    $region10: #{tpu_custom_call.1} parent=1 // pred_check
      _
    $region11: #{tpu_custom_call.1} parent=1 // pred_check_branch
      %36 = sbr.rel (0) target = $region13
    $region12: #{tpu_custom_call.1} parent=1 // pred_region
      _
    $region13: #{tpu_custom_call.1} parent=1 // pred_fallthru
      _
    // Predicated region
    $region14: #{tpu_custom_call.1} parent=1 // pred_check
      _
    $region15: #{tpu_custom_call.1} parent=1 // pred_check_branch
      %38 = sbr.rel (0) target = $region17
    $region16: #{tpu_custom_call.1} parent=1 // pred_region
      %39 = dma.done [#allocation3], 128
    $region17: #{tpu_custom_call.1} parent=1 // pred_fallthru
      _
    // Predicated region
    $region18: #{tpu_custom_call.1} parent=1 // pred_check
      _
    $region19: #{tpu_custom_call.1} parent=1 // pred_check_branch
      %41 = sbr.rel (0) target = $region21
    $region20: #{tpu_custom_call.1} parent=1 // pred_region
      %42 = dma.done [#allocation6], 3072
    $region21: #{tpu_custom_call.1} parent=1 // pred_fallthru
      _
    %v44 = vld [vmem:[#allocation2] sm:$0xf]
    %v45 = vld [vmem:[#allocation2 + $0x4] sm:$0xf]
    %v46 = vld [vmem:[#allocation5] sm:$0xf]
    %v47 = vld [vmem:[#allocation5 + $0x4] sm:$0xf]
    %v48 = vld [vmem:[#allocation5 + $0x8] sm:$0xf]
    %v49 = vld [vmem:[#allocation5 + $0xc] sm:$0xf]
    %v50 = vld [vmem:[#allocation5 + $0x10] sm:$0xf]
    %v51 = vld [vmem:[#allocation5 + $0x14] sm:$0xf]
    %v52 = vld [vmem:[#allocation5 + $0x18] sm:$0xf]
    %v53 = vld [vmem:[#allocation5 + $0x1c] sm:$0xf]
    %v54 = vld [vmem:[#allocation5 + $0x20] sm:$0xf]
    %v55 = vld [vmem:[#allocation5 + $0x24] sm:$0xf]
    %v56 = vld [vmem:[#allocation5 + $0x28] sm:$0xf]
    %v57 = vld [vmem:[#allocation5 + $0x2c] sm:$0xf]
    %v58 = vld [vmem:[#allocation5 + $0x30] sm:$0xf]
    %v59 = vld [vmem:[#allocation5 + $0x34] sm:$0xf]
    %v60 = vld [vmem:[#allocation5 + $0x38] sm:$0xf]
    %v61 = vld [vmem:[#allocation5 + $0x3c] sm:$0xf]
    %v62 = vld [vmem:[%s2] sm:$0x1]
    %v64 = vlaneseq
    %v65 = vshrl.u32 %v64, 7
    %v66 = vsub.s32 0, %v65
    %v67 = vrot.slane %v62, %v66
    %v71 = vunpack.c.l.b16 %v44
    %v72 = vunpack.c.l.b16 %v45
    %v73 = vpack.c.b16 %v72, %v71
    %v91 = vunpack.c.l.b16 %v46
    %v92 = vunpack.c.l.b16 %v47
    %v93 = vunpack.c.l.b16 %v48
    %v94 = vunpack.c.l.b16 %v49
    %v95 = vunpack.c.l.b16 %v50
    %v96 = vunpack.c.l.b16 %v51
    %v97 = vunpack.c.l.b16 %v52
    %v98 = vunpack.c.l.b16 %v53
    %v99 = vunpack.c.l.b16 %v54
    %v100 = vunpack.c.l.b16 %v55
    %v101 = vunpack.c.l.b16 %v56
    %v102 = vunpack.c.l.b16 %v57
    %v103 = vunpack.c.l.b16 %v58
    %v104 = vunpack.c.l.b16 %v59
    %v105 = vunpack.c.l.b16 %v60
    %v106 = vunpack.c.l.b16 %v61
    %v107 = vpack.c.b16 %v92, %v91
    %v108 = vpack.c.b16 %v94, %v93
    %v109 = vpack.c.b16 %v96, %v95
    %v110 = vpack.c.b16 %v98, %v97
    %v111 = vpack.c.b16 %v100, %v99
    %v112 = vpack.c.b16 %v102, %v101
    %v113 = vpack.c.b16 %v104, %v103
    %v114 = vpack.c.b16 %v106, %v105
    %123 = vmatprep.subr.bf16.mxu0 0
    %124 = vmatpush1.bf16.msra.mxu0 %v107
    %125 = vmatprep.subr.bf16.mxu0 0
    %126 = vmatpush1.bf16.msra.mxu0 %v108
    %127 = vmatprep.subr.bf16.mxu0 0
    %128 = vmatpush1.bf16.msra.mxu0 %v109
    %129 = vmatprep.subr.bf16.mxu0 0
    %130 = vmatpush1.bf16.msra.mxu0 %v110
    %131 = vmatprep.subr.bf16.mxu0 0
    %132 = vmatpush1.bf16.msra.mxu0 %v111
    %133 = vmatprep.subr.bf16.mxu0 0
    %134 = vmatpush1.bf16.msra.mxu0 %v112
    %135 = vmatprep.subr.bf16.mxu0 0
    %136 = vmatpush1.bf16.msra.mxu0 %v113
    %137 = vmatprep.subr.bf16.mxu0 0
    %138 = vmatpush1.bf16.msra.mxu0 %v114
    %139 = vmatprep.subr.bf16.mxu0 0
    %140 = vmatpush1.bf16.msra.mxu0 0
    %141 = vmatprep.subr.bf16.mxu0 0
    %142 = vmatpush1.bf16.msra.mxu0 0
    %143 = vmatprep.subr.bf16.mxu0 0
    %144 = vmatpush1.bf16.msra.mxu0 0
    %145 = vmatprep.subr.bf16.mxu0 0
    %146 = vmatpush1.bf16.msra.mxu0 0
    %147 = vmatprep.subr.bf16.mxu0 0
    %148 = vmatpush1.bf16.msra.mxu0 0
    %149 = vmatprep.subr.bf16.mxu0 0
    %150 = vmatpush1.bf16.msra.mxu0 0
    %151 = vmatprep.subr.bf16.mxu0 0
    %152 = vmatpush1.bf16.msra.mxu0 0
    %153 = vmatprep.subr.bf16.mxu0 0
    %154 = vmatpush1.bf16.msra.mxu0 0
    %155 = vmatprep.mubr.bf16.mxu0 0
    %156 = vmatmul.mubr.bf16.gmra.mrb[0].mxu0 %v73
    %v157 = vpop.f32.mrb[0].mxu0
    %v158 = vadd.f32 %v67, %v157
    %v159 = vpop.f32.mrb[0].mxu0
    %v160 = vpop.f32.mrb[0].mxu0
    %v161 = vadd.f32 %v67, %v160
    %v162 = vpop.f32.mrb[0].mxu0
    %163 = vdwg.mxu0
    %v164 = vmax.f32 %v158, 0.0
    %v165 = vmax.f32 %v161, 0.0
    %v166 = vpack.c.bf16 %v165, %v164
    %v167 = vld [vmem:[#allocation5 + $0x40] sm:$0xf]
    %v168 = vld [vmem:[#allocation5 + $0x44] sm:$0xf]
    %v169 = vld [vmem:[#allocation5 + $0x48] sm:$0xf]
    %v170 = vld [vmem:[#allocation5 + $0x4c] sm:$0xf]
    %v171 = vld [vmem:[#allocation5 + $0x50] sm:$0xf]
    %v172 = vld [vmem:[#allocation5 + $0x54] sm:$0xf]
    %v173 = vld [vmem:[#allocation5 + $0x58] sm:$0xf]
    %v174 = vld [vmem:[#allocation5 + $0x5c] sm:$0xf]
    %v175 = vld [vmem:[#allocation5 + $0x60] sm:$0xf]
    %v176 = vld [vmem:[#allocation5 + $0x64] sm:$0xf]
    %v177 = vld [vmem:[#allocation5 + $0x68] sm:$0xf]
    %v178 = vld [vmem:[#allocation5 + $0x6c] sm:$0xf]
    %v179 = vld [vmem:[#allocation5 + $0x70] sm:$0xf]
    %v180 = vld [vmem:[#allocation5 + $0x74] sm:$0xf]
    %v181 = vld [vmem:[#allocation5 + $0x78] sm:$0xf]
    %v182 = vld [vmem:[#allocation5 + $0x7c] sm:$0xf]
    %v183 = vld [vmem:[%s2 + $0x1] sm:$0x1]
    %v185 = vlaneseq
    %v186 = vshrl.u32 %v185, 7
    %v187 = vsub.s32 0, %v186
    %v188 = vrot.slane %v183, %v187
    %v206 = vunpack.c.l.b16 %v167
    %v207 = vunpack.c.l.b16 %v168
    %v208 = vunpack.c.l.b16 %v169
    %v209 = vunpack.c.l.b16 %v170
    %v210 = vunpack.c.l.b16 %v171
    %v211 = vunpack.c.l.b16 %v172
    %v212 = vunpack.c.l.b16 %v173
    %v213 = vunpack.c.l.b16 %v174
    %v214 = vunpack.c.l.b16 %v175
    %v215 = vunpack.c.l.b16 %v176
    %v216 = vunpack.c.l.b16 %v177
    %v217 = vunpack.c.l.b16 %v178
    %v218 = vunpack.c.l.b16 %v179
    %v219 = vunpack.c.l.b16 %v180
    %v220 = vunpack.c.l.b16 %v181
    %v221 = vunpack.c.l.b16 %v182
    %v222 = vpack.c.b16 %v207, %v206
    %v223 = vpack.c.b16 %v209, %v208
    %v224 = vpack.c.b16 %v211, %v210
    %v225 = vpack.c.b16 %v213, %v212
    %v226 = vpack.c.b16 %v215, %v214
    %v227 = vpack.c.b16 %v217, %v216
    %v228 = vpack.c.b16 %v219, %v218
    %v229 = vpack.c.b16 %v221, %v220
    %238 = vmatprep.subr.bf16.mxu0 0
    %239 = vmatpush1.bf16.msra.mxu0 %v222
    %240 = vmatprep.subr.bf16.mxu0 0
    %241 = vmatpush1.bf16.msra.mxu0 %v223
    %242 = vmatprep.subr.bf16.mxu0 0
    %243 = vmatpush1.bf16.msra.mxu0 %v224
    %244 = vmatprep.subr.bf16.mxu0 0
    %245 = vmatpush1.bf16.msra.mxu0 %v225
    %246 = vmatprep.subr.bf16.mxu0 0
    %247 = vmatpush1.bf16.msra.mxu0 %v226
    %248 = vmatprep.subr.bf16.mxu0 0
    %249 = vmatpush1.bf16.msra.mxu0 %v227
    %250 = vmatprep.subr.bf16.mxu0 0
    %251 = vmatpush1.bf16.msra.mxu0 %v228
    %252 = vmatprep.subr.bf16.mxu0 0
    %253 = vmatpush1.bf16.msra.mxu0 %v229
    %254 = vmatprep.subr.bf16.mxu0 0
    %255 = vmatpush1.bf16.msra.mxu0 0
    %256 = vmatprep.subr.bf16.mxu0 0
    %257 = vmatpush1.bf16.msra.mxu0 0
    %258 = vmatprep.subr.bf16.mxu0 0
    %259 = vmatpush1.bf16.msra.mxu0 0
    %260 = vmatprep.subr.bf16.mxu0 0
    %261 = vmatpush1.bf16.msra.mxu0 0
    %262 = vmatprep.subr.bf16.mxu0 0
    %263 = vmatpush1.bf16.msra.mxu0 0
    %264 = vmatprep.subr.bf16.mxu0 0
    %265 = vmatpush1.bf16.msra.mxu0 0
    %266 = vmatprep.subr.bf16.mxu0 0
    %267 = vmatpush1.bf16.msra.mxu0 0
    %268 = vmatprep.subr.bf16.mxu0 0
    %269 = vmatpush1.bf16.msra.mxu0 0
    %270 = vmatprep.mubr.bf16.mxu0 0
    %271 = vmatmul.mubr.bf16.gmra.mrb[0].mxu0 %v166
    %v272 = vpop.f32.mrb[0].mxu0
    %v273 = vadd.f32 %v188, %v272
    %v274 = vpop.f32.mrb[0].mxu0
    %v275 = vpop.f32.mrb[0].mxu0
    %v276 = vadd.f32 %v188, %v275
    %v277 = vpop.f32.mrb[0].mxu0
    %278 = vdwg.mxu0
    %v279 = vmax.f32 %v273, 0.0
    %v280 = vmax.f32 %v276, 0.0
    %v281 = vpack.c.bf16 %v280, %v279
    %v282 = vld [vmem:[#allocation5 + $0x80] sm:$0xf]
    %v283 = vld [vmem:[#allocation5 + $0x84] sm:$0xf]
    %v284 = vld [vmem:[#allocation5 + $0x88] sm:$0xf]
    %v285 = vld [vmem:[#allocation5 + $0x8c] sm:$0xf]
    %v286 = vld [vmem:[#allocation5 + $0x90] sm:$0xf]
    %v287 = vld [vmem:[#allocation5 + $0x94] sm:$0xf]
    %v288 = vld [vmem:[#allocation5 + $0x98] sm:$0xf]
    %v289 = vld [vmem:[#allocation5 + $0x9c] sm:$0xf]
    %v290 = vld [vmem:[#allocation5 + $0xa0] sm:$0xf]
    %v291 = vld [vmem:[#allocation5 + $0xa4] sm:$0xf]
    %v292 = vld [vmem:[#allocation5 + $0xa8] sm:$0xf]
    %v293 = vld [vmem:[#allocation5 + $0xac] sm:$0xf]
    %v294 = vld [vmem:[#allocation5 + $0xb0] sm:$0xf]
    %v295 = vld [vmem:[#allocation5 + $0xb4] sm:$0xf]
    %v296 = vld [vmem:[#allocation5 + $0xb8] sm:$0xf]
    %v297 = vld [vmem:[#allocation5 + $0xbc] sm:$0xf]
    %v298 = vld [vmem:[%s2 + $0x2] sm:$0x1]
    %v300 = vlaneseq
    %v301 = vshrl.u32 %v300, 7
    %v302 = vsub.s32 0, %v301
    %v303 = vrot.slane %v298, %v302
    %v321 = vunpack.c.l.b16 %v282
    %v322 = vunpack.c.l.b16 %v283
    %v323 = vunpack.c.l.b16 %v284
    %v324 = vunpack.c.l.b16 %v285
    %v325 = vunpack.c.l.b16 %v286
    %v326 = vunpack.c.l.b16 %v287
    %v327 = vunpack.c.l.b16 %v288
    %v328 = vunpack.c.l.b16 %v289
    %v329 = vunpack.c.l.b16 %v290
    %v330 = vunpack.c.l.b16 %v291
    %v331 = vunpack.c.l.b16 %v292
    %v332 = vunpack.c.l.b16 %v293
    %v333 = vunpack.c.l.b16 %v294
    %v334 = vunpack.c.l.b16 %v295
    %v335 = vunpack.c.l.b16 %v296
    %v336 = vunpack.c.l.b16 %v297
    %v337 = vpack.c.b16 %v322, %v321
    %v338 = vpack.c.b16 %v324, %v323
    %v339 = vpack.c.b16 %v326, %v325
    %v340 = vpack.c.b16 %v328, %v327
    %v341 = vpack.c.b16 %v330, %v329
    %v342 = vpack.c.b16 %v332, %v331
    %v343 = vpack.c.b16 %v334, %v333
    %v344 = vpack.c.b16 %v336, %v335
    %353 = vmatprep.subr.bf16.mxu0 0
    %354 = vmatpush1.bf16.msra.mxu0 %v337
    %355 = vmatprep.subr.bf16.mxu0 0
    %356 = vmatpush1.bf16.msra.mxu0 %v338
    %357 = vmatprep.subr.bf16.mxu0 0
    %358 = vmatpush1.bf16.msra.mxu0 %v339
    %359 = vmatprep.subr.bf16.mxu0 0
    %360 = vmatpush1.bf16.msra.mxu0 %v340
    %361 = vmatprep.subr.bf16.mxu0 0
    %362 = vmatpush1.bf16.msra.mxu0 %v341
    %363 = vmatprep.subr.bf16.mxu0 0
    %364 = vmatpush1.bf16.msra.mxu0 %v342
    %365 = vmatprep.subr.bf16.mxu0 0
    %366 = vmatpush1.bf16.msra.mxu0 %v343
    %367 = vmatprep.subr.bf16.mxu0 0
    %368 = vmatpush1.bf16.msra.mxu0 %v344
    %369 = vmatprep.subr.bf16.mxu0 0
    %370 = vmatpush1.bf16.msra.mxu0 0
    %371 = vmatprep.subr.bf16.mxu0 0
    %372 = vmatpush1.bf16.msra.mxu0 0
    %373 = vmatprep.subr.bf16.mxu0 0
    %374 = vmatpush1.bf16.msra.mxu0 0
    %375 = vmatprep.subr.bf16.mxu0 0
    %376 = vmatpush1.bf16.msra.mxu0 0
    %377 = vmatprep.subr.bf16.mxu0 0
    %378 = vmatpush1.bf16.msra.mxu0 0
    %379 = vmatprep.subr.bf16.mxu0 0
    %380 = vmatpush1.bf16.msra.mxu0 0
    %381 = vmatprep.subr.bf16.mxu0 0
    %382 = vmatpush1.bf16.msra.mxu0 0
    %383 = vmatprep.subr.bf16.mxu0 0
    %384 = vmatpush1.bf16.msra.mxu0 0
    %385 = vmatprep.mubr.bf16.mxu0 0
    %386 = vmatmul.mubr.bf16.gmra.mrb[0].mxu0 %v281
    %v387 = vpop.f32.mrb[0].mxu0
    %v388 = vadd.f32 %v303, %v387
    %v389 = vpop.f32.mrb[0].mxu0
    %v390 = vpop.f32.mrb[0].mxu0
    %v391 = vadd.f32 %v303, %v390
    %v392 = vpop.f32.mrb[0].mxu0
    %393 = vdwg.mxu0
    %394 = vst [vmem:[#allocation7] sm:$0xff] %v388
    %395 = vst [vmem:[#allocation7 + $0x8] sm:$0xff] %v391
    // Predicated region
    $region22: #{tpu_custom_call.1} parent=1 // pred_check
      _
    $region23: #{tpu_custom_call.1} parent=1 // pred_check_branch
      %397 = sbr.rel (0) target = $region25
    $region24: #{tpu_custom_call.1} parent=1 // pred_region
      %s399 = ssub.s32 256, 256
      %400 = vsyncadd [#allocation4], %s399
      %s401 = sshll.u32 [#allocation7], 4
      %s402 = int_to_ptr.vmem [resolvable:$true] %s401
      %407 = dma.vmem_to_hbm [thread:$0]  %s402, 256, %s3, [#allocation4], 128, 128, 8
    $region25: #{tpu_custom_call.1} parent=1 // pred_fallthru
      _
    // Predicated region
    $region26: #{tpu_custom_call.1} parent=1 // pred_check
      _
    $region27: #{tpu_custom_call.1} parent=1 // pred_check_branch
      %409 = sbr.rel (0) target = $region29
    $region28: #{tpu_custom_call.1} parent=1 // pred_region
      %410 = dma.done [#allocation4], 256
    $region29: #{tpu_custom_call.1} parent=1 // pred_fallthru
      _
    %411 = vsyncpa [#allocation3], 1
    %412 = vsyncpa [#allocation6], 1
    %413 = vsyncpa [#allocation4], 1

</llo_original>
